<compile_context>
chip_gen: v7x
topology: tpu7x:2x2x1
jax: 0.10.0
libtpu: 0.0.40
codegen_flags: <defaults>
</compile_context>

<pallas_src>
import jax
import jax.numpy as jnp
from jax.experimental import pallas as pl
from jax.experimental.pallas import tpu as pltpu


def _deepstream_kernel(boxes_ref, cls_ref, out_ref):
    """boxes_ref: (1, tn, 4); cls_ref: (1, tn, C); out_ref: (1, tn, 6)."""
    scores = cls_ref[...]                                   # native dtype, (1, tn, C)
    num_classes = scores.shape[-1]

    # Max over classes (lane axis -> XLU reduce).
    best = jnp.max(scores, axis=-1, keepdims=True)          # (1, tn, 1)

    # First-occurrence argmax: smallest class index attaining the max.
    # NOTE: NaN scores would differ from torch.max (strict-equality never picks NaN).
    iota = jax.lax.broadcasted_iota(jnp.int32, scores.shape, dimension=2)
    idx = jnp.where(scores == best, iota, jnp.int32(num_classes))
    label = jnp.min(idx, axis=-1, keepdims=True)            # (1, tn, 1) int32

    out_ref[:, :, 0:4] = boxes_ref[...].astype(out_ref.dtype)
    out_ref[:, :, 4:5] = best.astype(out_ref.dtype)
    # Mirrors `labels.to(boxes.dtype)` (lossy for bf16 outputs with C > 256).
    out_ref[:, :, 5:6] = label.astype(out_ref.dtype)


def deepstream_output(boxes, class_scores, *, tile_n=2048):
    """boxes: [B, N, 4], class_scores: [B, N, C] -> [B, N, 6]."""
    B, N, four = boxes.shape
    assert four == 4
    Bc, Nc, C = class_scores.shape
    assert (B, N) == (Bc, Nc)
    out_dtype = boxes.dtype

    cls_isz = jnp.dtype(class_scores.dtype).itemsize
    box_isz = jnp.dtype(boxes.dtype).itemsize
    out_isz = jnp.dtype(out_dtype).itemsize

    # Anchor tile: multiple of 8 (sublane rule; minor dims C/4/6 are full dims),
    # as large as possible under a conservative VMEM budget (double-buffered
    # blocks must also fit v7x's smaller VMEM).
    vmem_budget = 8 * 1024 * 1024
    bytes_per_anchor = 2 * (C * cls_isz + 4 * box_isz + 6 * out_isz)
    tn_cap = max(8, (vmem_budget // bytes_per_anchor) // 8 * 8)
    tn = min(tile_n, tn_cap, N)
    tn = (tn // 8) * 8
    if tn <= 0 or tn >= N:
        tn = N  # full-dim block (allowed even when N % 8 != 0)

    grid = (B, pl.cdiv(N, tn))

    cost = pl.CostEstimate(
        flops=4 * B * N * C,  # max-reduce + eq + select + min-reduce per class/anchor
        transcendentals=0,
        bytes_accessed=B * N * (C * cls_isz + 4 * box_isz + 6 * out_isz),
    )

    return pl.pallas_call(
        _deepstream_kernel,
        out_shape=jax.ShapeDtypeStruct((B, N, 6), out_dtype),
        grid_spec=pltpu.PrefetchScalarGridSpec(
            num_scalar_prefetch=0,
            grid=grid,
            in_specs=[
                pl.BlockSpec((1, tn, 4), lambda b, n: (b, n, 0)),
                pl.BlockSpec((1, tn, C), lambda b, n: (b, n, 0)),
            ],
            out_specs=pl.BlockSpec((1, tn, 6), lambda b, n: (b, n, 0)),
        ),
        compiler_params=pltpu.CompilerParams(
            dimension_semantics=("parallel", "parallel"),
        ),
        cost_estimate=cost,
    )(boxes, class_scores)


def _reference(boxes, class_scores):
    scores = jnp.max(class_scores, axis=-1, keepdims=True)
    labels = jnp.argmax(class_scores, axis=-1, keepdims=True).astype(boxes.dtype)
    return jnp.concatenate([boxes, scores.astype(boxes.dtype), labels], axis=-1)


if __name__ == "__main__":
    key = jax.random.PRNGKey(0)
    kb, kc, kb2, kc2 = jax.random.split(key, 4)

    # Representative small shapes: 2 images, 512 anchors, 80 classes.
    B, N, C = 2, 512, 80
    boxes = jax.random.uniform(kb, (B, N, 4), dtype=jnp.float32)
    class_scores = jax.random.uniform(kc, (B, N, C), dtype=jnp.float32)

    # tile_n=128 -> grid (2, 4): exercises the N-tiled, pipelined path.
    out = deepstream_output(boxes, class_scores, tile_n=128)
    out = jax.block_until_ready(out)
    ref = _reference(boxes, class_scores)
    assert out.shape == (B, N, 6)
    assert jnp.allclose(out, ref), "mismatch vs. reference (tiled path)"

    # Ragged-tile path: N not a multiple of the tile (relies on OOB-block masking).
    B2, N2, C2 = 1, 136, 80
    boxes2 = jax.random.uniform(kb2, (B2, N2, 4), dtype=jnp.float32)
    class_scores2 = jax.random.uniform(kc2, (B2, N2, C2), dtype=jnp.float32)
    out2 = deepstream_output(boxes2, class_scores2, tile_n=128)
    out2 = jax.block_until_ready(out2)
    ref2 = _reference(boxes2, class_scores2)
    assert out2.shape == (B2, N2, 6)
    assert jnp.allclose(out2, ref2), "mismatch vs. reference (ragged path)"

    print("KERNEL_OK")
</pallas_src>

<mosaic_0001>
module attributes {stable_mosaic.version = 11 : i64} {
  func.func @_deepstream_kernel(%arg0: i32, %arg1: i32, %arg2: memref<1x128x4xf32, #tpu.memory_space<vmem>>, %arg3: memref<1x128x80xf32, #tpu.memory_space<vmem>>, %arg4: memref<1x128x6xf32, #tpu.memory_space<vmem>>) attributes {dimension_semantics = [#tpu.dimension_semantics<parallel>, #tpu.dimension_semantics<parallel>], iteration_bounds = array<i64: 2, 4>, scalar_prefetch = 0 : i64, scratch_operands = 0 : i64, tpu.core_type = #tpu.core_type<tc>, window_params = [{transform_indices = @transform_0, window_bounds = array<i64: 1, 128, 4>}, {transform_indices = @transform_1, window_bounds = array<i64: 1, 128, 80>}, {transform_indices = @transform_2, window_bounds = array<i64: 1, 128, 6>}]} {
    %c0 = arith.constant 0 : index
    %c0_0 = arith.constant 0 : index
    %c0_1 = arith.constant 0 : index
    %0 = vector.load %arg3[%c0, %c0_0, %c0_1] : memref<1x128x80xf32, #tpu.memory_space<vmem>>, vector<1x128x80xf32>
    %cst = arith.constant dense<0xFF800000> : vector<1x128xf32>
    %1 = vector.multi_reduction <maximumf>, %0, %cst [2] : vector<1x128x80xf32> to vector<1x128xf32>
    %2 = vector.shape_cast %1 : vector<1x128xf32> to vector<1x128x1xf32>
    %3 = tpu.iota {dimensions = array<i32: 2>} : vector<1x128x80xi32>
    %4 = vector.broadcast %2 : vector<1x128x1xf32> to vector<1x128x80xf32>
    %5 = arith.cmpf oeq, %0, %4 : vector<1x128x80xf32>
    %c80_i32 = arith.constant 80 : i32
    %6 = vector.broadcast %c80_i32 : i32 to vector<1x128x80xi32>
    %7 = arith.select %5, %3, %6 : vector<1x128x80xi1>, vector<1x128x80xi32>
    %cst_2 = arith.constant dense<2147483647> : vector<1x128xi32>
    %8 = vector.multi_reduction <minsi>, %7, %cst_2 [2] : vector<1x128x80xi32> to vector<1x128xi32>
    %9 = vector.shape_cast %8 : vector<1x128xi32> to vector<1x128x1xi32>
    %c0_3 = arith.constant 0 : index
    %c0_4 = arith.constant 0 : index
    %c0_5 = arith.constant 0 : index
    %10 = vector.load %arg2[%c0_3, %c0_4, %c0_5] : memref<1x128x4xf32, #tpu.memory_space<vmem>>, vector<1x128x4xf32>
    %c0_6 = arith.constant 0 : index
    %c0_7 = arith.constant 0 : index
    %c0_8 = arith.constant 0 : index
    %11 = vector.load %arg4[%c0_6, %c0_7, %c0_8] : memref<1x128x6xf32, #tpu.memory_space<vmem>>, vector<1x128x4xf32>
    tpu.vector_store %arg4[%c0_6, %c0_7, %c0_8], %10 {strides = array<i32>} : memref<1x128x6xf32, #tpu.memory_space<vmem>>, vector<1x128x4xf32>,
    %c0_9 = arith.constant 0 : index
    %c0_10 = arith.constant 0 : index
    %c4 = arith.constant 4 : index
    %12 = vector.load %arg4[%c0_9, %c0_10, %c4] : memref<1x128x6xf32, #tpu.memory_space<vmem>>, vector<1x128x1xf32>
    tpu.vector_store %arg4[%c0_9, %c0_10, %c4], %2 {strides = array<i32>} : memref<1x128x6xf32, #tpu.memory_space<vmem>>, vector<1x128x1xf32>,
    %13 = arith.sitofp %9 : vector<1x128x1xi32> to vector<1x128x1xf32>
    %c0_11 = arith.constant 0 : index
    %c0_12 = arith.constant 0 : index
    %c5 = arith.constant 5 : index
    %14 = vector.load %arg4[%c0_11, %c0_12, %c5] : memref<1x128x6xf32, #tpu.memory_space<vmem>>, vector<1x128x1xf32>
    tpu.vector_store %arg4[%c0_11, %c0_12, %c5], %13 {strides = array<i32>} : memref<1x128x6xf32, #tpu.memory_space<vmem>>, vector<1x128x1xf32>,
    return
  }
  func.func @transform_0(%arg0: i32, %arg1: i32) -> (i32, i32, i32) {
    %c0_i32 = arith.constant 0 : i32
    %c0_i32_0 = arith.constant 0 : i32
    return %arg0, %arg1, %c0_i32 : i32, i32, i32
  }
  func.func @transform_1(%arg0: i32, %arg1: i32) -> (i32, i32, i32) {
    %c0_i32 = arith.constant 0 : i32
    %c0_i32_0 = arith.constant 0 : i32
    return %arg0, %arg1, %c0_i32 : i32, i32, i32
  }
  func.func @transform_2(%arg0: i32, %arg1: i32) -> (i32, i32, i32) {
    %c0_i32 = arith.constant 0 : i32
    %c0_i32_0 = arith.constant 0 : i32
    return %arg0, %arg1, %c0_i32 : i32, i32, i32
  }
}

</mosaic_0001>

<llo_original>
// kernel: tpu_custom_call.1
$region0: #{tpu_custom_call.1}
  #allocation0 [shape = 'u32[]', space=smem, size = 0x4, offset = 0x4, fixed_abs, tag = 'smem constant byte address 0x4 - core index']
  #allocation1 [shape = 'u32[144,128]{1,0:T(1,128)}', space=vmem, size = 0x12000, scoped, tag = 'internal scratch']
  %s0 = inlined_call_operand.vmem [shape: f32[2,512,4], index: 0, kind: input, shape index: {}]
  %s1 = inlined_call_operand.vmem [shape: f32[2,512,80], index: 1, kind: input, shape index: {}]
  %s2 = inlined_call_operand.vmem [shape: f32[2,512,6], index: 2, kind: output, shape index: {}]
  %s3 = sld [smem:[#allocation0]]
  $region41: #{tpu_custom_call.1} parent=0
    _
  %s5 = ssub.s32 1, %s3
  %s6 = scalar_select 0, %s5, %s3
  loop: start=0, step=1, limit=10
  $region2: #{tpu_custom_call.1} parent=0 // loop_pre_header
    _
  $region3: #{tpu_custom_call.1} parent=0 // loop_header
    %s8 = sphi 0, %s12
    %p9 = scmp.ge.s32.totalorder %s8, 10
    %s15 = sphi 0, %s27
    %s16 = sphi 0, %s23
    %s17 = sphi 0, %s15
    %s18 = sphi 0, %s16
    %s19 = sphi 0, %s17
    %s20 = sphi 0, %s18
    %s32 = sphi 0, %s34
    %s35 = sphi 0, %s32
    %s36 = sphi 0, %s35
    %s52 = sphi 0, %s36
    %s60 = sphi 0, %s62
    %s63 = sphi 0, %s60
    %s64 = sphi 0, %s63
    %s80 = sphi 0, %s64
    %s88 = sphi 0, %s90
    %s91 = sphi 0, %s88
    %s92 = sphi 0, %s91
    %s108 = sphi 0, %s92
  $region4: #{tpu_custom_call.1} parent=0 // loop_header_branch
    %11 = sbr.rel (%p9) target = $region8
  $region5: #{tpu_custom_call.1} parent=0 // loop_body
    %s13 = ssub.s32 %s8, 1
    %s14 = ssub.s32 %s8, 2
    %s21 = sadd.s32 1, %s16
    %p22 = scmp.ge.s32.totalorder %s21, 4
    %s23 = scalar_select %p22, 0, %s21
    %s24 = sadd.s32 1, %s15
    %s25 = scalar_select %p22, %s24, %s15
    %p26 = scmp.ge.s32.totalorder %s25, 2
    %s27 = scalar_select %p26, 0, %s25
    %s28 = ssub.s32 %s15, %s27
    %s29 = ssub.s32 %s16, %s23
    %s30 = sor.u32 %s28, %s29
    %p31 = scmp.eq.s32.totalorder %s30, 0
    %s33 = sadd.s32 %s32, 1
    %s34 = scalar_select %p31, %s32, %s33
    %p37 = pneg %p31
    %p38 = scmp.eq.s32.totalorder %s8, 7
    %p39 = por %p37, %p38
    %p40 = scmp.ne.s32.totalorder %s32, %s35
    %p41 = scmp.eq.s32.totalorder %s8, 0
    %p42 = por %p40, %p41
    %p43 = scmp.ne.s32.totalorder %s32, %s35
    %p44 = scmp.eq.s32.totalorder %s13, 7
    %p45 = por %p43, %p44
    %p46 = scmp.ne.s32.totalorder %s35, %s36
    %p47 = scmp.eq.s32.totalorder %s13, 0
    %p48 = por %p46, %p47
    %p49 = scmp.ne.s32.totalorder %s35, %s36
    %p50 = scmp.eq.s32.totalorder %s14, 7
    %p51 = por %p49, %p50
    %p53 = scmp.ne.s32.totalorder %s36, %s52
    %p54 = scmp.eq.s32.totalorder %s14, 0
    %p55 = por %p53, %p54
    %s56 = ssub.s32 %s15, %s27
    %s57 = ssub.s32 %s16, %s23
    %s58 = sor.u32 %s56, %s57
    %p59 = scmp.eq.s32.totalorder %s58, 0
    %s61 = sadd.s32 %s60, 1
    %s62 = scalar_select %p59, %s60, %s61
    %p65 = pneg %p59
    %p66 = scmp.eq.s32.totalorder %s8, 7
    %p67 = por %p65, %p66
    %p68 = scmp.ne.s32.totalorder %s60, %s63
    %p69 = scmp.eq.s32.totalorder %s8, 0
    %p70 = por %p68, %p69
    %p71 = scmp.ne.s32.totalorder %s60, %s63
    %p72 = scmp.eq.s32.totalorder %s13, 7
    %p73 = por %p71, %p72
    %p74 = scmp.ne.s32.totalorder %s63, %s64
    %p75 = scmp.eq.s32.totalorder %s13, 0
    %p76 = por %p74, %p75
    %p77 = scmp.ne.s32.totalorder %s63, %s64
    %p78 = scmp.eq.s32.totalorder %s14, 7
    %p79 = por %p77, %p78
    %p81 = scmp.ne.s32.totalorder %s64, %s80
    %p82 = scmp.eq.s32.totalorder %s14, 0
    %p83 = por %p81, %p82
    %s84 = ssub.s32 %s15, %s27
    %s85 = ssub.s32 %s16, %s23
    %s86 = sor.u32 %s84, %s85
    %p87 = scmp.eq.s32.totalorder %s86, 0
    %s89 = sadd.s32 %s88, 1
    %s90 = scalar_select %p87, %s88, %s89
    %p93 = pneg %p87
    %p94 = scmp.eq.s32.totalorder %s8, 7
    %p95 = por %p93, %p94
    %p96 = scmp.ne.s32.totalorder %s88, %s91
    %p97 = scmp.eq.s32.totalorder %s8, 0
    %p98 = por %p96, %p97
    %p99 = scmp.ne.s32.totalorder %s88, %s91
    %p100 = scmp.eq.s32.totalorder %s13, 7
    %p101 = por %p99, %p100
    %p102 = scmp.ne.s32.totalorder %s91, %s92
    %p103 = scmp.eq.s32.totalorder %s13, 0
    %p104 = por %p102, %p103
    %p105 = scmp.ne.s32.totalorder %s91, %s92
    %p106 = scmp.eq.s32.totalorder %s14, 7
    %p107 = por %p105, %p106
    %p109 = scmp.ne.s32.totalorder %s92, %s108
    %p110 = scmp.eq.s32.totalorder %s14, 0
    %p111 = por %p109, %p110
    %p112 = scmp.le.s32.totalorder 1, %s8
    %p113 = scmp.lt.s32.totalorder %s8, 9
    %p114 = pnand %p112, %p113
    %p115 = pneg %p114
    // Predicated region
    $region9: #{tpu_custom_call.1} parent=5 // pred_check
      _
    $region10: #{tpu_custom_call.1} parent=5 // pred_check_branch
      %117 = sbr.rel (%p114) target = $region12
    $region11: #{tpu_custom_call.1} parent=5 // pred_region
      %s118 = ssub.s32 %s8, 1
    $region12: #{tpu_custom_call.1} parent=5 // pred_fallthru
      _
    %p119 = scmp.lt.s32.totalorder %s8, 8
    // Predicated region
    $region13: #{tpu_custom_call.1} parent=5 // pred_check
      %p120 = pneg %p119
    $region14: #{tpu_custom_call.1} parent=5 // pred_check_branch
      %122 = sbr.rel (%p120) target = $region16
    $region15: #{tpu_custom_call.1} parent=5 // pred_region
      // Predicated region
      $region17: #{tpu_custom_call.1} parent=15 // pred_check
        %p123 = pneg %p42
      $region18: #{tpu_custom_call.1} parent=15 // pred_check_branch
        %125 = sbr.rel (%p123) target = $region20
      $region19: #{tpu_custom_call.1} parent=15 // pred_region
        %s126 = smul.u32 16, %s16
        %p127 = scmp.lt.s32.totalorder %s15, 1
        %s128 = scalar_select %p127, %s15, 1
        %p129 = scmp.lt.s32.totalorder %s126, 63
        %s130 = scalar_select %p129, %s126, 63
        %s131 = smul.addr %s128, 64
        %s132 = sadd.s32 %s130, %s131
        %s133 = smul.addr %s132, 8
        %s134 = scalar_lea.vmem %s0, %s133
        %s135 = smul.u32 16, %s16
      $region20: #{tpu_custom_call.1} parent=15 // pred_fallthru
        _
      // Predicated region
      $region21: #{tpu_custom_call.1} parent=15 // pred_check
        %p136 = pneg %p70
      $region22: #{tpu_custom_call.1} parent=15 // pred_check_branch
        %138 = sbr.rel (%p136) target = $region24
      $region23: #{tpu_custom_call.1} parent=15 // pred_region
        %s139 = smul.u32 16, %s16
        %p140 = scmp.lt.s32.totalorder %s15, 1
        %s141 = scalar_select %p140, %s15, 1
        %p142 = scmp.lt.s32.totalorder %s139, 63
        %s143 = scalar_select %p142, %s139, 63
        %s144 = smul.addr %s141, 64
        %s145 = sadd.s32 %s143, %s144
        %s146 = smul.addr %s145, 8
        %s147 = scalar_lea.vmem %s1, %s146
        %s148 = smul.u32 16, %s16
      $region24: #{tpu_custom_call.1} parent=15 // pred_fallthru
        _
    $region16: #{tpu_custom_call.1} parent=5 // pred_fallthru
      _
    %p149 = scmp.le.s32.totalorder 1, %s8
    %p150 = scmp.lt.s32.totalorder %s8, 9
    %p151 = pnand %p149, %p150
    %p152 = pneg %p151
    // Predicated region
    $region25: #{tpu_custom_call.1} parent=5 // pred_check
      _
    $region26: #{tpu_custom_call.1} parent=5 // pred_check_branch
      %154 = sbr.rel (%p151) target = $region28
    $region27: #{tpu_custom_call.1} parent=5 // pred_region
      %s155 = ssub.s32 %s8, 1
      %s156 = smul.u32 16, %s18
      %p157 = scmp.lt.s32.totalorder %s17, 1
      %s158 = scalar_select %p157, %s17, 1
      %p159 = scmp.lt.s32.totalorder %s156, 63
      %s160 = scalar_select %p159, %s156, 63
      %s161 = smul.addr %s158, 64
      %s162 = sadd.s32 %s160, %s161
      %s163 = smul.addr %s162, 8
      %s164 = scalar_lea.vmem %s0, %s163
      %p165 = pneg %p48
      %p166 = pneg %p45
      %s167 = smul.u32 16, %s18
      %p168 = scmp.lt.s32.totalorder %s17, 1
      %s169 = scalar_select %p168, %s17, 1
      %p170 = scmp.lt.s32.totalorder %s167, 63
      %s171 = scalar_select %p170, %s167, 63
      %s172 = smul.addr %s169, 64
      %s173 = sadd.s32 %s171, %s172
      %s174 = smul.addr %s173, 8
      %s175 = scalar_lea.vmem %s1, %s174
      %p176 = pneg %p76
      %p177 = pneg %p73
      %p178 = pneg %p104
      %p179 = pneg %p101
      %s180 = smul.u32 16, %s18
      %p181 = scmp.lt.s32.totalorder %s17, 1
      %s182 = scalar_select %p181, %s17, 1
      %p183 = scmp.lt.s32.totalorder %s180, 63
      %s184 = scalar_select %p183, %s180, 63
      %s185 = smul.addr %s182, 64
      %s186 = sadd.s32 %s184, %s185
      %s187 = smul.addr %s186, 8
      %s188 = scalar_lea.vmem %s2, %s187
      %s189 = smul.u32 16, %s18
      %p190 = scmp.lt.s32.totalorder %s17, 1
      %s191 = scalar_select %p190, %s17, 1
      %p192 = scmp.lt.s32.totalorder %s189, 63
      %s193 = scalar_select %p192, %s189, 63
      %s194 = smul.addr %s191, 64
      %s195 = sadd.s32 %s193, %s194
      %s196 = smul.addr %s195, 8
      %s197 = scalar_lea.vmem %s0, %s196
      %s198 = smul.u32 16, %s18
      %s199 = smul.u32 16, %s18
      %p200 = scmp.lt.s32.totalorder %s17, 1
      %s201 = scalar_select %p200, %s17, 1
      %p202 = scmp.lt.s32.totalorder %s199, 63
      %s203 = scalar_select %p202, %s199, 63
      %s204 = smul.addr %s201, 64
      %s205 = sadd.s32 %s203, %s204
      %s206 = smul.addr %s205, 8
      %s207 = scalar_lea.vmem %s1, %s206
      %s208 = smul.u32 16, %s18
      %s209 = smul.u32 16, %s18
      %p210 = scmp.lt.s32.totalorder %s17, 1
      %s211 = scalar_select %p210, %s17, 1
      %p212 = scmp.lt.s32.totalorder %s209, 63
      %s213 = scalar_select %p212, %s209, 63
      %s214 = smul.addr %s211, 64
      %s215 = sadd.s32 %s213, %s214
      %s216 = smul.addr %s215, 8
      %s217 = scalar_lea.vmem %s2, %s216
      %s218 = smul.u32 16, %s18
      %v219 = vld [vmem:[%s207] sm:$0xff]
      %v220 = vld [vmem:[%s207 + $0x8] sm:$0xff]
      %v221 = vld [vmem:[%s207 + $0x10] sm:$0xff]
      %v222 = vld [vmem:[%s207 + $0x18] sm:$0xff]
      %v223 = vld [vmem:[%s207 + $0x20] sm:$0xff]
      %v224 = vld [vmem:[%s207 + $0x28] sm:$0xff]
      %v225 = vld [vmem:[%s207 + $0x30] sm:$0xff]
      %v226 = vld [vmem:[%s207 + $0x38] sm:$0xff]
      %v227 = vld [vmem:[%s207 + $0x40] sm:$0xff]
      %v228 = vld [vmem:[%s207 + $0x48] sm:$0xff]
      %v229 = vld [vmem:[%s207 + $0x50] sm:$0xff]
      %v230 = vld [vmem:[%s207 + $0x58] sm:$0xff]
      %v231 = vld [vmem:[%s207 + $0x60] sm:$0xff]
      %v232 = vld [vmem:[%s207 + $0x68] sm:$0xff]
      %v233 = vld [vmem:[%s207 + $0x70] sm:$0xff]
      %v234 = vld [vmem:[%s207 + $0x78] sm:$0xff]
      %vm235 = vcmask 654336
      %v236 = vsel %vm235, %v219, -inf
      %237 = vmax.xlane.f32.xlu0 %v236
      %v238 = vpop.xlane.xlu0 %237
      %v239 = vsel %vm235, %v220, -inf
      %240 = vmax.xlane.f32.xlu0 %v239
      %v241 = vpop.xlane.xlu0 %240
      %v242 = vsel %vm235, %v221, -inf
      %243 = vmax.xlane.f32.xlu0 %v242
      %v244 = vpop.xlane.xlu0 %243
      %v245 = vsel %vm235, %v222, -inf
      %246 = vmax.xlane.f32.xlu0 %v245
      %v247 = vpop.xlane.xlu0 %246
      %v248 = vsel %vm235, %v223, -inf
      %249 = vmax.xlane.f32.xlu0 %v248
      %v250 = vpop.xlane.xlu0 %249
      %v251 = vsel %vm235, %v224, -inf
      %252 = vmax.xlane.f32.xlu0 %v251
      %v253 = vpop.xlane.xlu0 %252
      %v254 = vsel %vm235, %v225, -inf
      %255 = vmax.xlane.f32.xlu0 %v254
      %v256 = vpop.xlane.xlu0 %255
      %v257 = vsel %vm235, %v226, -inf
      %258 = vmax.xlane.f32.xlu0 %v257
      %v259 = vpop.xlane.xlu0 %258
      %v260 = vsel %vm235, %v227, -inf
      %261 = vmax.xlane.f32.xlu0 %v260
      %v262 = vpop.xlane.xlu0 %261
      %v263 = vsel %vm235, %v228, -inf
      %264 = vmax.xlane.f32.xlu0 %v263
      %v265 = vpop.xlane.xlu0 %264
      %v266 = vsel %vm235, %v229, -inf
      %267 = vmax.xlane.f32.xlu0 %v266
      %v268 = vpop.xlane.xlu0 %267
      %v269 = vsel %vm235, %v230, -inf
      %270 = vmax.xlane.f32.xlu0 %v269
      %v271 = vpop.xlane.xlu0 %270
      %v272 = vsel %vm235, %v231, -inf
      %273 = vmax.xlane.f32.xlu0 %v272
      %v274 = vpop.xlane.xlu0 %273
      %v275 = vsel %vm235, %v232, -inf
      %276 = vmax.xlane.f32.xlu0 %v275
      %v277 = vpop.xlane.xlu0 %276
      %v278 = vsel %vm235, %v233, -inf
      %279 = vmax.xlane.f32.xlu0 %v278
      %v280 = vpop.xlane.xlu0 %279
      %v281 = vsel %vm235, %v234, -inf
      %282 = vmax.xlane.f32.xlu0 %v281
      %v283 = vpop.xlane.xlu0 %282
      %v284 = vlaneseq
      %v285 = vand.u32 %v284, 127
      %vm286 = vcmp.eq.f32.partialorder %v219, %v238
      %vm287 = vcmp.eq.f32.partialorder %v220, %v241
      %vm288 = vcmp.eq.f32.partialorder %v221, %v244
      %vm289 = vcmp.eq.f32.partialorder %v222, %v247
      %vm290 = vcmp.eq.f32.partialorder %v223, %v250
      %vm291 = vcmp.eq.f32.partialorder %v224, %v253
      %vm292 = vcmp.eq.f32.partialorder %v225, %v256
      %vm293 = vcmp.eq.f32.partialorder %v226, %v259
      %vm294 = vcmp.eq.f32.partialorder %v227, %v262
      %vm295 = vcmp.eq.f32.partialorder %v228, %v265
      %vm296 = vcmp.eq.f32.partialorder %v229, %v268
      %vm297 = vcmp.eq.f32.partialorder %v230, %v271
      %vm298 = vcmp.eq.f32.partialorder %v231, %v274
      %vm299 = vcmp.eq.f32.partialorder %v232, %v277
      %vm300 = vcmp.eq.f32.partialorder %v233, %v280
      %vm301 = vcmp.eq.f32.partialorder %v234, %v283
      %v302 = vsel %vm286, %v285, 80
      %v303 = vsel %vm287, %v285, 80
      %v304 = vsel %vm288, %v285, 80
      %v305 = vsel %vm289, %v285, 80
      %v306 = vsel %vm290, %v285, 80
      %v307 = vsel %vm291, %v285, 80
      %v308 = vsel %vm292, %v285, 80
      %v309 = vsel %vm293, %v285, 80
      %v310 = vsel %vm294, %v285, 80
      %v311 = vsel %vm295, %v285, 80
      %v312 = vsel %vm296, %v285, 80
      %v313 = vsel %vm297, %v285, 80
      %v314 = vsel %vm298, %v285, 80
      %v315 = vsel %vm299, %v285, 80
      %v316 = vsel %vm300, %v285, 80
      %v317 = vsel %vm301, %v285, 80
      %v318 = vsel %vm235, %v302, 2147483647
      %v319 = vand.u32 %v318, 65535
      %v320 = vshra.s32 %v318, 16
      %v321 = vcvt.s32.f32 %v319
      %v322 = vcvt.s32.f32 %v320
      %323 = vmin.xlane.f32.xlu0 %v322
      %v324 = vpop.xlane.xlu0 %323
      %vm325 = vcmp.eq.f32.partialorder %v322, %v324
      %v326 = vsel %vm325, %v321, inf
      %327 = vmin.xlane.f32.xlu0 %v326
      %v328 = vpop.xlane.xlu0 %327
      %v329 = vcvt.f32.s32 %v328
      %v330 = vcvt.f32.s32 %v324
      %v331 = vshll.u32 %v330, 16
      %v332 = vadd.s32 %v331, %v329
      %v333 = vsel %vm235, %v303, 2147483647
      %v334 = vand.u32 %v333, 65535
      %v335 = vshra.s32 %v333, 16
      %v336 = vcvt.s32.f32 %v334
      %v337 = vcvt.s32.f32 %v335
      %338 = vmin.xlane.f32.xlu0 %v337
      %v339 = vpop.xlane.xlu0 %338
      %vm340 = vcmp.eq.f32.partialorder %v337, %v339
      %v341 = vsel %vm340, %v336, inf
      %342 = vmin.xlane.f32.xlu0 %v341
      %v343 = vpop.xlane.xlu0 %342
      %v344 = vcvt.f32.s32 %v343
      %v345 = vcvt.f32.s32 %v339
      %v346 = vshll.u32 %v345, 16
      %v347 = vadd.s32 %v346, %v344
      %v348 = vsel %vm235, %v304, 2147483647
      %v349 = vand.u32 %v348, 65535
      %v350 = vshra.s32 %v348, 16
      %v351 = vcvt.s32.f32 %v349
      %v352 = vcvt.s32.f32 %v350
      %353 = vmin.xlane.f32.xlu0 %v352
      %v354 = vpop.xlane.xlu0 %353
      %vm355 = vcmp.eq.f32.partialorder %v352, %v354
      %v356 = vsel %vm355, %v351, inf
      %357 = vmin.xlane.f32.xlu0 %v356
      %v358 = vpop.xlane.xlu0 %357
      %v359 = vcvt.f32.s32 %v358
      %v360 = vcvt.f32.s32 %v354
      %v361 = vshll.u32 %v360, 16
      %v362 = vadd.s32 %v361, %v359
      %v363 = vsel %vm235, %v305, 2147483647
      %v364 = vand.u32 %v363, 65535
      %v365 = vshra.s32 %v363, 16
      %v366 = vcvt.s32.f32 %v364
      %v367 = vcvt.s32.f32 %v365
      %368 = vmin.xlane.f32.xlu0 %v367
      %v369 = vpop.xlane.xlu0 %368
      %vm370 = vcmp.eq.f32.partialorder %v367, %v369
      %v371 = vsel %vm370, %v366, inf
      %372 = vmin.xlane.f32.xlu0 %v371
      %v373 = vpop.xlane.xlu0 %372
      %v374 = vcvt.f32.s32 %v373
      %v375 = vcvt.f32.s32 %v369
      %v376 = vshll.u32 %v375, 16
      %v377 = vadd.s32 %v376, %v374
      %v378 = vsel %vm235, %v306, 2147483647
      %v379 = vand.u32 %v378, 65535
      %v380 = vshra.s32 %v378, 16
      %v381 = vcvt.s32.f32 %v379
      %v382 = vcvt.s32.f32 %v380
      %383 = vmin.xlane.f32.xlu0 %v382
      %v384 = vpop.xlane.xlu0 %383
      %vm385 = vcmp.eq.f32.partialorder %v382, %v384
      %v386 = vsel %vm385, %v381, inf
      %387 = vmin.xlane.f32.xlu0 %v386
      %v388 = vpop.xlane.xlu0 %387
      %v389 = vcvt.f32.s32 %v388
      %v390 = vcvt.f32.s32 %v384
      %v391 = vshll.u32 %v390, 16
      %v392 = vadd.s32 %v391, %v389
      %v393 = vsel %vm235, %v307, 2147483647
      %v394 = vand.u32 %v393, 65535
      %v395 = vshra.s32 %v393, 16
      %v396 = vcvt.s32.f32 %v394
      %v397 = vcvt.s32.f32 %v395
      %398 = vmin.xlane.f32.xlu0 %v397
      %v399 = vpop.xlane.xlu0 %398
      %vm400 = vcmp.eq.f32.partialorder %v397, %v399
      %v401 = vsel %vm400, %v396, inf
      %402 = vmin.xlane.f32.xlu0 %v401
      %v403 = vpop.xlane.xlu0 %402
      %v404 = vcvt.f32.s32 %v403
      %v405 = vcvt.f32.s32 %v399
      %v406 = vshll.u32 %v405, 16
      %v407 = vadd.s32 %v406, %v404
      %v408 = vsel %vm235, %v308, 2147483647
      %v409 = vand.u32 %v408, 65535
      %v410 = vshra.s32 %v408, 16
      %v411 = vcvt.s32.f32 %v409
      %v412 = vcvt.s32.f32 %v410
      %413 = vmin.xlane.f32.xlu0 %v412
      %v414 = vpop.xlane.xlu0 %413
      %vm415 = vcmp.eq.f32.partialorder %v412, %v414
      %v416 = vsel %vm415, %v411, inf
      %417 = vmin.xlane.f32.xlu0 %v416
      %v418 = vpop.xlane.xlu0 %417
      %v419 = vcvt.f32.s32 %v418
      %v420 = vcvt.f32.s32 %v414
      %v421 = vshll.u32 %v420, 16
      %v422 = vadd.s32 %v421, %v419
      %v423 = vsel %vm235, %v309, 2147483647
      %v424 = vand.u32 %v423, 65535
      %v425 = vshra.s32 %v423, 16
      %v426 = vcvt.s32.f32 %v424
      %v427 = vcvt.s32.f32 %v425
      %428 = vmin.xlane.f32.xlu0 %v427
      %v429 = vpop.xlane.xlu0 %428
      %vm430 = vcmp.eq.f32.partialorder %v427, %v429
      %v431 = vsel %vm430, %v426, inf
      %432 = vmin.xlane.f32.xlu0 %v431
      %v433 = vpop.xlane.xlu0 %432
      %v434 = vcvt.f32.s32 %v433
      %v435 = vcvt.f32.s32 %v429
      %v436 = vshll.u32 %v435, 16
      %v437 = vadd.s32 %v436, %v434
      %v438 = vsel %vm235, %v310, 2147483647
      %v439 = vand.u32 %v438, 65535
      %v440 = vshra.s32 %v438, 16
      %v441 = vcvt.s32.f32 %v439
      %v442 = vcvt.s32.f32 %v440
      %443 = vmin.xlane.f32.xlu0 %v442
      %v444 = vpop.xlane.xlu0 %443
      %vm445 = vcmp.eq.f32.partialorder %v442, %v444
      %v446 = vsel %vm445, %v441, inf
      %447 = vmin.xlane.f32.xlu0 %v446
      %v448 = vpop.xlane.xlu0 %447
      %v449 = vcvt.f32.s32 %v448
      %v450 = vcvt.f32.s32 %v444
      %v451 = vshll.u32 %v450, 16
      %v452 = vadd.s32 %v451, %v449
      %v453 = vsel %vm235, %v311, 2147483647
      %v454 = vand.u32 %v453, 65535
      %v455 = vshra.s32 %v453, 16
      %v456 = vcvt.s32.f32 %v454
      %v457 = vcvt.s32.f32 %v455
      %458 = vmin.xlane.f32.xlu0 %v457
      %v459 = vpop.xlane.xlu0 %458
      %vm460 = vcmp.eq.f32.partialorder %v457, %v459
      %v461 = vsel %vm460, %v456, inf
      %462 = vmin.xlane.f32.xlu0 %v461
      %v463 = vpop.xlane.xlu0 %462
      %v464 = vcvt.f32.s32 %v463
      %v465 = vcvt.f32.s32 %v459
      %v466 = vshll.u32 %v465, 16
      %v467 = vadd.s32 %v466, %v464
      %v468 = vsel %vm235, %v312, 2147483647
      %v469 = vand.u32 %v468, 65535
      %v470 = vshra.s32 %v468, 16
      %v471 = vcvt.s32.f32 %v469
      %v472 = vcvt.s32.f32 %v470
      %473 = vmin.xlane.f32.xlu0 %v472
      %v474 = vpop.xlane.xlu0 %473
      %vm475 = vcmp.eq.f32.partialorder %v472, %v474
      %v476 = vsel %vm475, %v471, inf
      %477 = vmin.xlane.f32.xlu0 %v476
      %v478 = vpop.xlane.xlu0 %477
      %v479 = vcvt.f32.s32 %v478
      %v480 = vcvt.f32.s32 %v474
      %v481 = vshll.u32 %v480, 16
      %v482 = vadd.s32 %v481, %v479
      %v483 = vsel %vm235, %v313, 2147483647
      %v484 = vand.u32 %v483, 65535
      %v485 = vshra.s32 %v483, 16
      %v486 = vcvt.s32.f32 %v484
      %v487 = vcvt.s32.f32 %v485
      %488 = vmin.xlane.f32.xlu0 %v487
      %v489 = vpop.xlane.xlu0 %488
      %vm490 = vcmp.eq.f32.partialorder %v487, %v489
      %v491 = vsel %vm490, %v486, inf
      %492 = vmin.xlane.f32.xlu0 %v491
      %v493 = vpop.xlane.xlu0 %492
      %v494 = vcvt.f32.s32 %v493
      %v495 = vcvt.f32.s32 %v489
      %v496 = vshll.u32 %v495, 16
      %v497 = vadd.s32 %v496, %v494
      %v498 = vsel %vm235, %v314, 2147483647
      %v499 = vand.u32 %v498, 65535
      %v500 = vshra.s32 %v498, 16
      %v501 = vcvt.s32.f32 %v499
      %v502 = vcvt.s32.f32 %v500
      %503 = vmin.xlane.f32.xlu0 %v502
      %v504 = vpop.xlane.xlu0 %503
      %vm505 = vcmp.eq.f32.partialorder %v502, %v504
      %v506 = vsel %vm505, %v501, inf
      %507 = vmin.xlane.f32.xlu0 %v506
      %v508 = vpop.xlane.xlu0 %507
      %v509 = vcvt.f32.s32 %v508
      %v510 = vcvt.f32.s32 %v504
      %v511 = vshll.u32 %v510, 16
      %v512 = vadd.s32 %v511, %v509
      %v513 = vsel %vm235, %v315, 2147483647
      %v514 = vand.u32 %v513, 65535
      %v515 = vshra.s32 %v513, 16
      %v516 = vcvt.s32.f32 %v514
      %v517 = vcvt.s32.f32 %v515
      %518 = vmin.xlane.f32.xlu0 %v517
      %v519 = vpop.xlane.xlu0 %518
      %vm520 = vcmp.eq.f32.partialorder %v517, %v519
      %v521 = vsel %vm520, %v516, inf
      %522 = vmin.xlane.f32.xlu0 %v521
      %v523 = vpop.xlane.xlu0 %522
      %v524 = vcvt.f32.s32 %v523
      %v525 = vcvt.f32.s32 %v519
      %v526 = vshll.u32 %v525, 16
      %v527 = vadd.s32 %v526, %v524
      %v528 = vsel %vm235, %v316, 2147483647
      %v529 = vand.u32 %v528, 65535
      %v530 = vshra.s32 %v528, 16
      %v531 = vcvt.s32.f32 %v529
      %v532 = vcvt.s32.f32 %v530
      %533 = vmin.xlane.f32.xlu0 %v532
      %v534 = vpop.xlane.xlu0 %533
      %vm535 = vcmp.eq.f32.partialorder %v532, %v534
      %v536 = vsel %vm535, %v531, inf
      %537 = vmin.xlane.f32.xlu0 %v536
      %v538 = vpop.xlane.xlu0 %537
      %v539 = vcvt.f32.s32 %v538
      %v540 = vcvt.f32.s32 %v534
      %v541 = vshll.u32 %v540, 16
      %v542 = vadd.s32 %v541, %v539
      %v543 = vsel %vm235, %v317, 2147483647
      %v544 = vand.u32 %v543, 65535
      %v545 = vshra.s32 %v543, 16
      %v546 = vcvt.s32.f32 %v544
      %v547 = vcvt.s32.f32 %v545
      %548 = vmin.xlane.f32.xlu0 %v547
      %v549 = vpop.xlane.xlu0 %548
      %vm550 = vcmp.eq.f32.partialorder %v547, %v549
      %v551 = vsel %vm550, %v546, inf
      %552 = vmin.xlane.f32.xlu0 %v551
      %v553 = vpop.xlane.xlu0 %552
      %v554 = vcvt.f32.s32 %v553
      %v555 = vcvt.f32.s32 %v549
      %v556 = vshll.u32 %v555, 16
      %v557 = vadd.s32 %v556, %v554
      %v558 = vld [vmem:[%s197] sm:$0xff]
      %v559 = vld [vmem:[%s197 + $0x8] sm:$0xff]
      %v560 = vld [vmem:[%s197 + $0x10] sm:$0xff]
      %v561 = vld [vmem:[%s197 + $0x18] sm:$0xff]
      %v562 = vld [vmem:[%s197 + $0x20] sm:$0xff]
      %v563 = vld [vmem:[%s197 + $0x28] sm:$0xff]
      %v564 = vld [vmem:[%s197 + $0x30] sm:$0xff]
      %v565 = vld [vmem:[%s197 + $0x38] sm:$0xff]
      %v566 = vld [vmem:[%s197 + $0x40] sm:$0xff]
      %v567 = vld [vmem:[%s197 + $0x48] sm:$0xff]
      %v568 = vld [vmem:[%s197 + $0x50] sm:$0xff]
      %v569 = vld [vmem:[%s197 + $0x58] sm:$0xff]
      %v570 = vld [vmem:[%s197 + $0x60] sm:$0xff]
      %v571 = vld [vmem:[%s197 + $0x68] sm:$0xff]
      %v572 = vld [vmem:[%s197 + $0x70] sm:$0xff]
      %v573 = vld [vmem:[%s197 + $0x78] sm:$0xff]
      %vm574 = vcmask 31744
      %575 = vst.msk [vmem:[%s217] sm:$0xff] %vm574, %v558
      %576 = vst.msk [vmem:[%s217 + $0x8] sm:$0xff] %vm574, %v559
      %577 = vst.msk [vmem:[%s217 + $0x10] sm:$0xff] %vm574, %v560
      %578 = vst.msk [vmem:[%s217 + $0x18] sm:$0xff] %vm574, %v561
      %579 = vst.msk [vmem:[%s217 + $0x20] sm:$0xff] %vm574, %v562
      %580 = vst.msk [vmem:[%s217 + $0x28] sm:$0xff] %vm574, %v563
      %581 = vst.msk [vmem:[%s217 + $0x30] sm:$0xff] %vm574, %v564
      %582 = vst.msk [vmem:[%s217 + $0x38] sm:$0xff] %vm574, %v565
      %583 = vst.msk [vmem:[%s217 + $0x40] sm:$0xff] %vm574, %v566
      %584 = vst.msk [vmem:[%s217 + $0x48] sm:$0xff] %vm574, %v567
      %585 = vst.msk [vmem:[%s217 + $0x50] sm:$0xff] %vm574, %v568
      %586 = vst.msk [vmem:[%s217 + $0x58] sm:$0xff] %vm574, %v569
      %587 = vst.msk [vmem:[%s217 + $0x60] sm:$0xff] %vm574, %v570
      %588 = vst.msk [vmem:[%s217 + $0x68] sm:$0xff] %vm574, %v571
      %589 = vst.msk [vmem:[%s217 + $0x70] sm:$0xff] %vm574, %v572
      %590 = vst.msk [vmem:[%s217 + $0x78] sm:$0xff] %vm574, %v573
      %vm591 = vcmask 39968
      %592 = vst.msk [vmem:[%s217] sm:$0xff] %vm591, %v238
      %593 = vst.msk [vmem:[%s217 + $0x8] sm:$0xff] %vm591, %v241
      %594 = vst.msk [vmem:[%s217 + $0x10] sm:$0xff] %vm591, %v244
      %595 = vst.msk [vmem:[%s217 + $0x18] sm:$0xff] %vm591, %v247
      %596 = vst.msk [vmem:[%s217 + $0x20] sm:$0xff] %vm591, %v250
      %597 = vst.msk [vmem:[%s217 + $0x28] sm:$0xff] %vm591, %v253
      %598 = vst.msk [vmem:[%s217 + $0x30] sm:$0xff] %vm591, %v256
      %599 = vst.msk [vmem:[%s217 + $0x38] sm:$0xff] %vm591, %v259
      %600 = vst.msk [vmem:[%s217 + $0x40] sm:$0xff] %vm591, %v262
      %601 = vst.msk [vmem:[%s217 + $0x48] sm:$0xff] %vm591, %v265
      %602 = vst.msk [vmem:[%s217 + $0x50] sm:$0xff] %vm591, %v268
      %603 = vst.msk [vmem:[%s217 + $0x58] sm:$0xff] %vm591, %v271
      %604 = vst.msk [vmem:[%s217 + $0x60] sm:$0xff] %vm591, %v274
      %605 = vst.msk [vmem:[%s217 + $0x68] sm:$0xff] %vm591, %v277
      %606 = vst.msk [vmem:[%s217 + $0x70] sm:$0xff] %vm591, %v280
      %607 = vst.msk [vmem:[%s217 + $0x78] sm:$0xff] %vm591, %v283
      %v608 = vcvt.s32.f32 %v332
      %v609 = vcvt.s32.f32 %v347
      %v610 = vcvt.s32.f32 %v362
      %v611 = vcvt.s32.f32 %v377
      %v612 = vcvt.s32.f32 %v392
      %v613 = vcvt.s32.f32 %v407
      %v614 = vcvt.s32.f32 %v422
      %v615 = vcvt.s32.f32 %v437
      %v616 = vcvt.s32.f32 %v452
      %v617 = vcvt.s32.f32 %v467
      %v618 = vcvt.s32.f32 %v482
      %v619 = vcvt.s32.f32 %v497
      %v620 = vcvt.s32.f32 %v512
      %v621 = vcvt.s32.f32 %v527
      %v622 = vcvt.s32.f32 %v542
      %v623 = vcvt.s32.f32 %v557
      %vm624 = vcmask 48168
      %625 = vst.msk [vmem:[%s217] sm:$0xff] %vm624, %v608
      %626 = vst.msk [vmem:[%s217 + $0x8] sm:$0xff] %vm624, %v609
      %627 = vst.msk [vmem:[%s217 + $0x10] sm:$0xff] %vm624, %v610
      %628 = vst.msk [vmem:[%s217 + $0x18] sm:$0xff] %vm624, %v611
      %629 = vst.msk [vmem:[%s217 + $0x20] sm:$0xff] %vm624, %v612
      %630 = vst.msk [vmem:[%s217 + $0x28] sm:$0xff] %vm624, %v613
      %631 = vst.msk [vmem:[%s217 + $0x30] sm:$0xff] %vm624, %v614
      %632 = vst.msk [vmem:[%s217 + $0x38] sm:$0xff] %vm624, %v615
      %633 = vst.msk [vmem:[%s217 + $0x40] sm:$0xff] %vm624, %v616
      %634 = vst.msk [vmem:[%s217 + $0x48] sm:$0xff] %vm624, %v617
      %635 = vst.msk [vmem:[%s217 + $0x50] sm:$0xff] %vm624, %v618
      %636 = vst.msk [vmem:[%s217 + $0x58] sm:$0xff] %vm624, %v619
      %637 = vst.msk [vmem:[%s217 + $0x60] sm:$0xff] %vm624, %v620
      %638 = vst.msk [vmem:[%s217 + $0x68] sm:$0xff] %vm624, %v621
      %639 = vst.msk [vmem:[%s217 + $0x70] sm:$0xff] %vm624, %v622
      %640 = vst.msk [vmem:[%s217 + $0x78] sm:$0xff] %vm624, %v623
      %s641 = smul.u32 16, %s18
      %p642 = scmp.lt.s32.totalorder %s17, 1
      %s643 = scalar_select %p642, %s17, 1
      %p644 = scmp.lt.s32.totalorder %s641, 63
      %s645 = scalar_select %p644, %s641, 63
      %s646 = smul.addr %s643, 64
      %s647 = sadd.s32 %s645, %s646
      %s648 = smul.addr %s647, 8
      %s649 = scalar_lea.vmem %s2, %s648
      // Predicated region
      $region29: #{tpu_custom_call.1} parent=27 // pred_check
        %p650 = pneg %p101
      $region30: #{tpu_custom_call.1} parent=27 // pred_check_branch
        %652 = sbr.rel (%p650) target = $region32
      $region31: #{tpu_custom_call.1} parent=27 // pred_region
        %s653 = smul.u32 16, %s18
      $region32: #{tpu_custom_call.1} parent=27 // pred_fallthru
        _
    $region28: #{tpu_custom_call.1} parent=5 // pred_fallthru
      _
    %p654 = scmp.le.s32.totalorder 2, %s8
    // Predicated region
    $region33: #{tpu_custom_call.1} parent=5 // pred_check
      %p655 = pneg %p654
    $region34: #{tpu_custom_call.1} parent=5 // pred_check_branch
      %657 = sbr.rel (%p655) target = $region36
    $region35: #{tpu_custom_call.1} parent=5 // pred_region
      %s658 = ssub.s32 %s8, 2
      // Predicated region
      $region37: #{tpu_custom_call.1} parent=35 // pred_check
        %p659 = pneg %p107
      $region38: #{tpu_custom_call.1} parent=35 // pred_check_branch
        %661 = sbr.rel (%p659) target = $region40
      $region39: #{tpu_custom_call.1} parent=35 // pred_region
        %s662 = smul.u32 16, %s20
        %p663 = scmp.lt.s32.totalorder %s19, 1
        %s664 = scalar_select %p663, %s19, 1
        %p665 = scmp.lt.s32.totalorder %s662, 63
        %s666 = scalar_select %p665, %s662, 63
        %s667 = smul.addr %s664, 64
        %s668 = sadd.s32 %s666, %s667
        %s669 = smul.addr %s668, 8
        %s670 = scalar_lea.vmem %s2, %s669
      $region40: #{tpu_custom_call.1} parent=35 // pred_fallthru
        _
    $region36: #{tpu_custom_call.1} parent=5 // pred_fallthru
      _
  $region6: #{tpu_custom_call.1} parent=0 // loop_footer
    %s12 = sadd.s32 1, %s8
  $region7: #{tpu_custom_call.1} parent=0 // loop_footer_branch
    %7 = sbr.rel target = $region3
  $region8: #{tpu_custom_call.1} parent=0 // loop_exit
    _

</llo_original>
